<compile_context>
chip_gen: v5e
topology: v5e:2x2
jax: 0.10.0
libtpu: 0.0.40
codegen_flags: <defaults>
</compile_context>

<pallas_src>
import functools

import jax
import jax.numpy as jnp
from jax.experimental import pallas as pl
from jax.experimental.pallas import tpu as pltpu

BATCH_NORM = True   # stand-in for FLAGS.BATCH_NORM
BN_EPS = 1e-5


# ----------------------------------------------------------------------------
# Weight / BN preparation helpers (run at trace time in the wrapper)
# ----------------------------------------------------------------------------
def _fold_bn(gamma, beta, running_mean, running_var):
    """Eval-mode BN as a per-channel (scale, bias) pair."""
    if BATCH_NORM:
        scale = gamma * jax.lax.rsqrt(running_var + BN_EPS)
        bias = beta - running_mean * scale
    else:
        scale = jnp.ones_like(gamma)
        bias = jnp.zeros_like(beta)
    return scale, bias


def _build_banded_rhs(w_hwio, width):
    """Expand (3, 3, Cin, Cout) conv weights into (3, (W+2)*Cin, W*Cout).

    R[kh, p*Cin + ci, w*Cout + co] = w[kh, p - w, ci, co] if 0 <= p - w <= 2
    else 0, so that out[., h, w, co] = sum_kh x_pad[., h+kh, :, :].flat @ R[kh].
    """
    _, _, cin, cout = w_hwio.shape
    wp = width + 2
    r5 = jnp.zeros((3, wp, cin, width, cout), w_hwio.dtype)
    for kw in range(3):
        # onehot[w, p] = 1  iff  p == w + kw
        onehot = (jnp.arange(width)[:, None] + kw
                  == jnp.arange(wp)[None, :]).astype(w_hwio.dtype)
        r5 = r5 + jnp.einsum("wp,kio->kpiwo", onehot, w_hwio[:, kw])
    return r5.reshape(3, wp * cin, width * cout)


# ----------------------------------------------------------------------------
# Generation-aware tiling
# ----------------------------------------------------------------------------
def _vmem_tile_bytes(rows, cols, dtype):
    """Physical VMEM bytes of a (rows, cols) tile after (sublane, lane) padding."""
    item = jnp.dtype(dtype).itemsize
    sublane = 8 * (4 // item)            # 8 rows for f32, 16 for bf16
    prows = -(-rows // sublane) * sublane
    pcols = -(-cols // 128) * 128
    return prows * pcols * item


def _vmem_budget_bytes():
    """(vmem_limit_bytes, tile_budget_bytes) for the current TPU generation."""
    try:
        cap = int(pltpu.get_tpu_info().vmem_capacity_bytes)
    except Exception:                    # be conservative (v7x: 64 MiB / core)
        cap = 64 * 1024 * 1024
    # 32 MiB scoped limit on v7x (64 MiB physical), 64 MiB on v5e/v6e (128 MiB).
    limit = min(64 * 1024 * 1024, cap // 2)
    return limit, (limit * 3) // 4       # headroom for compiler-internal scratch


def _choose_tiling(nd, h, in_slab_bytes, out_slab_bytes, fixed_bytes,
                   tile_budget_bytes, max_acc_rows=128, max_chunks=8):
    """Pick (slabs per grid step b, slabs per in-kernel chunk).

    Constraints:
      * grid >= 2 whenever nd >= 2 so both v7x TensorCores get work,
      * <= max_acc_rows f32 accumulator rows live at a time (vreg pressure),
      * double-buffered input + output tiles plus resident constants fit the
        VMEM budget,
      * b is a multiple of the chunk size (chunk count capped -> small unroll).
    """
    b_grid = (nd + 1) // 2 if nd >= 2 else 1
    chunk = max(1, min(max_acc_rows // max(h, 1), b_grid))
    per_slab = 2 * (in_slab_bytes + out_slab_bytes)        # double-buffered in+out
    b_vmem = max(1, (tile_budget_bytes - fixed_bytes) // per_slab)
    b = min(b_grid, b_vmem, chunk * max_chunks)
    b = max(chunk, (b // chunk) * chunk)                   # multiple of chunk
    return int(b), int(chunk)


# ----------------------------------------------------------------------------
# Kernel
# ----------------------------------------------------------------------------
def _block_kernel(x_ref, r_ref, bias_ref, o_ref, *, chunk_slabs):
    """One grid step: `b` depth slabs, processed `chunk_slabs` slabs at a time.

    x_ref:    (b, H+2, (W+2)*Cin)     bf16, spatially padded, lane-dense
    r_ref:    (3, (W+2)*Cin, W*Cout)  bf16 banded weights (BN scale folded in)
    bias_ref: (1, W*Cout)             f32 fused BN bias, tiled per out column
    o_ref:    (b, H, W*Cout)          f32 lane-dense output
    """
    b, h, wcout = o_ref.shape
    kx = x_ref.shape[-1]
    rows = chunk_slabs * h
    bias = bias_ref[...]                       # (1, W*Cout) f32, hoisted

    # Static unroll over chunks (<= 8): each chunk's f32 accumulator is
    # <= 128 rows (<= 32 vregs), and chunk i's store overlaps chunk i+1's
    # matmuls instead of one huge accumulator spilling the vreg file.
    for c in range(b // chunk_slabs):
        s0 = c * chunk_slabs
        acc = jnp.zeros((rows, wcout), dtype=jnp.float32)
        for kh in range(3):                    # 3 bf16 MXU matmuls per chunk
            lhs = x_ref[s0:s0 + chunk_slabs, kh:kh + h, :].reshape(rows, kx)
            acc = acc + jnp.dot(lhs, r_ref[kh],
                                preferred_element_type=jnp.float32)
        acc = jnp.maximum(acc + bias, 0.0)     # fused BN bias + ReLU (f32)
        o_ref[s0:s0 + chunk_slabs, :, :] = (
            acc.reshape(chunk_slabs, h, wcout).astype(o_ref.dtype))


# ----------------------------------------------------------------------------
# Wrapper
# ----------------------------------------------------------------------------
@jax.jit
def block_forward(x_ncdhw, w_oidhw, gamma, beta, running_mean, running_var):
    """Forward pass of `Block` (nplanes == 1).  x: (N, C, D, H, W) float32."""
    n, cin, d, h, w = x_ncdhw.shape
    cout = w_oidhw.shape[0]
    assert w_oidhw.shape == (cout, cin, 1, 3, 3)
    nd = n * d

    # Eval-mode BatchNorm folded into the conv weights (conv is linear).
    scale, bias = _fold_bn(gamma, beta, running_mean, running_var)

    # OIDHW (depth 1) -> HWIO with the BN scale folded in, expanded to the
    # banded Toeplitz RHS and quantized to bf16 for the MXU.
    w_hwio = jnp.transpose(w_oidhw[:, :, 0, :, :], (2, 3, 1, 0)) * scale
    rhs = _build_banded_rhs(w_hwio.astype(jnp.float32), w).astype(jnp.bfloat16)
    bias_row = jnp.tile(bias.astype(jnp.float32), w).reshape(1, w * cout)

    # NCDHW -> (N*D, H+2, (W+2)*Cin) bf16: fuse N,D (depth kernel is 1 and
    # depth padding 0), pad H/W by 1, fold (W+2, Cin) into a lane-dense last
    # dim.  Casting to bf16 first halves the bytes the relayout has to move.
    x = x_ncdhw.astype(jnp.bfloat16)
    x = jnp.transpose(x, (0, 2, 3, 4, 1)).reshape(nd, h, w, cin)
    x = jnp.pad(x, ((0, 0), (1, 1), (1, 1), (0, 0)))
    x = x.reshape(nd, h + 2, (w + 2) * cin)

    # Generation-aware tiling: budget double-buffered in+out tiles plus the
    # resident (double-buffered) RHS/bias against this generation's VMEM.
    vmem_limit, tile_budget = _vmem_budget_bytes()
    in_slab = _vmem_tile_bytes(h + 2, (w + 2) * cin, jnp.bfloat16)
    out_slab = _vmem_tile_bytes(h, w * cout, x_ncdhw.dtype)
    fixed = (2 * 3 * _vmem_tile_bytes((w + 2) * cin, w * cout, jnp.bfloat16)
             + 2 * _vmem_tile_bytes(1, w * cout, jnp.float32)
             + (1 << 20))                                  # compiler scratch margin
    b, chunk = _choose_tiling(nd, h, in_slab, out_slab, fixed, tile_budget)

    # Pad N*D up to a multiple of b (no b=1 fallback for awkward N*D); the
    # padded slabs are discarded after the call.
    nd_pad = -(-nd // b) * b
    if nd_pad != nd:
        x = jnp.pad(x, ((0, nd_pad - nd), (0, 0), (0, 0)))

    kernel = functools.partial(_block_kernel, chunk_slabs=chunk)
    out = pl.pallas_call(
        kernel,
        out_shape=jax.ShapeDtypeStruct((nd_pad, h, w * cout), x_ncdhw.dtype),
        grid_spec=pltpu.PrefetchScalarGridSpec(
            num_scalar_prefetch=0,
            grid=(nd_pad // b,),
            in_specs=[
                pl.BlockSpec((b, h + 2, (w + 2) * cin), lambda i: (i, 0, 0)),
                # Constant index_map blocks: Pallas skips the re-DMA across
                # grid steps; bf16 halves the (dead) second buffer's footprint.
                pl.BlockSpec((3, (w + 2) * cin, w * cout), lambda i: (0, 0, 0)),
                pl.BlockSpec((1, w * cout), lambda i: (0, 0)),
            ],
            out_specs=pl.BlockSpec((b, h, w * cout), lambda i: (i, 0, 0)),
        ),
        compiler_params=pltpu.CompilerParams(
            dimension_semantics=("parallel",),
            vmem_limit_bytes=vmem_limit,
            # TODO(synk): benchmark fused strided NCDHW reads vs. a
            #             materialized coalesced copy of the transposed input.
            allow_input_fusion=[True, False, False],
        ),
    )(x, rhs, bias_row)

    # (N*D_pad, H, W*Cout) -> NCDHW
    out = out[:nd].reshape(n, d, h, w, cout)
    return jnp.transpose(out, (0, 4, 1, 2, 3))


# ----------------------------------------------------------------------------
# Parameters, reference, test
# ----------------------------------------------------------------------------
def init_params(key, inplanes, outplanes, nplanes=1):
    """Deterministic parameter init matching the module's shapes."""
    assert nplanes == 1, "this synthetic kernel implements the nplanes==1 case"
    kw, kg, kb, km, kv = jax.random.split(key, 5)
    fan_in = inplanes * nplanes * 3 * 3
    bound = 1.0 / jnp.sqrt(jnp.float32(fan_in))
    w = jax.random.uniform(kw, (outplanes, inplanes, nplanes, 3, 3),
                           minval=-bound, maxval=bound, dtype=jnp.float32)
    gamma = jax.random.uniform(kg, (outplanes,), minval=0.5, maxval=1.5,
                               dtype=jnp.float32)
    beta = jax.random.uniform(kb, (outplanes,), minval=-0.5, maxval=0.5,
                              dtype=jnp.float32)
    running_mean = 0.1 * jax.random.normal(km, (outplanes,), dtype=jnp.float32)
    running_var = jax.random.uniform(kv, (outplanes,), minval=0.5, maxval=1.5,
                                     dtype=jnp.float32)
    return w, gamma, beta, running_mean, running_var


def _reference(x, w, gamma, beta, running_mean, running_var, *, quantize=False):
    """f32 conv+BN+ReLU reference.  With quantize=True it applies the same
    bf16 rounding to the input and the BN-folded weights as the kernel does
    (accumulation stays f32), giving a tight apples-to-apples comparison."""
    scale, bias = _fold_bn(gamma, beta, running_mean, running_var)
    w_folded = w * scale[:, None, None, None, None]
    if quantize:
        x = x.astype(jnp.bfloat16).astype(jnp.float32)
        w_folded = w_folded.astype(jnp.bfloat16).astype(jnp.float32)
    out = jax.lax.conv_general_dilated(
        x, w_folded, window_strides=(1, 1, 1),
        padding=[(0, 0), (1, 1), (1, 1)],
        dimension_numbers=("NCDHW", "OIDHW", "NCDHW"))
    out = out + bias[None, :, None, None, None]
    return jnp.maximum(out, 0.0)


def _check(x, params):
    out = jax.block_until_ready(block_forward(x, *params))
    n, _, d, h, w = x.shape
    cout = params[0].shape[0]
    assert out.shape == (n, cout, d, h, w), out.shape
    # Tight check: same bf16 rounding of inputs/weights as the kernel.
    ref_q = _reference(x, *params, quantize=True)
    assert jnp.allclose(out, ref_q, rtol=1e-3, atol=1e-3), \
        float(jnp.max(jnp.abs(out - ref_q)))
    # Sanity check vs. exact f32 module semantics (bf16 MXU inputs => ~1e-2
    # level differences expected, per the perf-review tolerance note).
    ref = _reference(x, *params)
    assert jnp.allclose(out, ref, rtol=3e-2, atol=3e-2), \
        float(jnp.max(jnp.abs(out - ref)))


if __name__ == "__main__":
    key = jax.random.PRNGKey(0)
    kx1, kx2, kp = jax.random.split(key, 3)

    N, Cin, Cout, H, W = 2, 4, 8, 16, 16
    params = init_params(kp, Cin, Cout, nplanes=1)

    # Small shape: N*D = 6 -> 2 grid steps of 3 slabs (single chunk per step),
    # so both v7x TensorCores get work even at this size.
    x1 = jax.random.normal(kx1, (N, Cin, 3, H, W), dtype=jnp.float32)
    _check(x1, params)

    # Larger N*D = 40 exercises the in-kernel M-chunking (b=16 slabs/step in
    # two 128-row chunks) and the N*D padding path (padded to 48, grid=3).
    x2 = jax.random.normal(kx2, (N, Cin, 20, H, W), dtype=jnp.float32)
    _check(x2, params)

    print("KERNEL_OK")
</pallas_src>

<mosaic_0001>
module attributes {stable_mosaic.version = 11 : i64} {
  func.func @_block_kernel(%arg0: i32, %arg1: memref<3x18x72xbf16, #tpu.memory_space<vmem>>, %arg2: memref<3x72x128xbf16, #tpu.memory_space<vmem>>, %arg3: memref<1x128xf32, #tpu.memory_space<vmem>>, %arg4: memref<3x16x128xf32, #tpu.memory_space<vmem>>) attributes {dimension_semantics = [#tpu.dimension_semantics<parallel>], iteration_bounds = array<i64: 2>, scalar_prefetch = 0 : i64, scratch_operands = 0 : i64, tpu.core_type = #tpu.core_type<tc>, window_params = [{transform_indices = @transform_0, window_bounds = array<i64: 3, 18, 72>}, {pipeline_mode = #tpu.pipeline_mode<synchronous>, transform_indices = @transform_1, window_bounds = array<i64: 3, 72, 128>}, {pipeline_mode = #tpu.pipeline_mode<synchronous>, transform_indices = @transform_2, window_bounds = array<i64: 1, 128>}, {transform_indices = @transform_3, window_bounds = array<i64: 3, 16, 128>}]} {
    %c0 = arith.constant 0 : index
    %c0_0 = arith.constant 0 : index
    %0 = vector.load %arg3[%c0, %c0_0] : memref<1x128xf32, #tpu.memory_space<vmem>>, vector<1x128xf32>
    %cst = arith.constant 0.000000e+00 : f32
    %1 = vector.broadcast %cst : f32 to vector<48x128xf32>
    %c0_1 = arith.constant 0 : index
    %c0_2 = arith.constant 0 : index
    %c0_3 = arith.constant 0 : index
    %2 = vector.load %arg1[%c0_1, %c0_2, %c0_3] : memref<3x18x72xbf16, #tpu.memory_space<vmem>>, vector<3x16x72xbf16>
    %3 = vector.shape_cast %2 : vector<3x16x72xbf16> to vector<48x72xbf16>
    %c0_4 = arith.constant 0 : index
    %c0_5 = arith.constant 0 : index
    %c0_6 = arith.constant 0 : index
    %4 = vector.load %arg2[%c0_4, %c0_5, %c0_6] : memref<3x72x128xbf16, #tpu.memory_space<vmem>>, vector<1x72x128xbf16>
    %5 = vector.shape_cast %4 : vector<1x72x128xbf16> to vector<72x128xbf16>
    %cst_7 = arith.constant dense<0.000000e+00> : vector<48x128xf32>
    %6 = tpu.matmul %3, %5, %cst_7 {dimension_numbers = #tpu.dot_dimension_numbers<[1], [0], [0], [1], [0, 0, 1, 1], [], []>} : vector<48x72xbf16>, vector<72x128xbf16>, vector<48x128xf32> -> vector<48x128xf32>
    %7 = arith.addf %1, %6 : vector<48x128xf32>
    %c0_8 = arith.constant 0 : index
    %c1 = arith.constant 1 : index
    %c0_9 = arith.constant 0 : index
    %8 = vector.load %arg1[%c0_8, %c1, %c0_9] : memref<3x18x72xbf16, #tpu.memory_space<vmem>>, vector<3x16x72xbf16>
    %9 = vector.shape_cast %8 : vector<3x16x72xbf16> to vector<48x72xbf16>
    %c1_10 = arith.constant 1 : index
    %c0_11 = arith.constant 0 : index
    %c0_12 = arith.constant 0 : index
    %10 = vector.load %arg2[%c1_10, %c0_11, %c0_12] : memref<3x72x128xbf16, #tpu.memory_space<vmem>>, vector<1x72x128xbf16>
    %11 = vector.shape_cast %10 : vector<1x72x128xbf16> to vector<72x128xbf16>
    %cst_13 = arith.constant dense<0.000000e+00> : vector<48x128xf32>
    %12 = tpu.matmul %9, %11, %cst_13 {dimension_numbers = #tpu.dot_dimension_numbers<[1], [0], [0], [1], [0, 0, 1, 1], [], []>} : vector<48x72xbf16>, vector<72x128xbf16>, vector<48x128xf32> -> vector<48x128xf32>
    %13 = arith.addf %7, %12 : vector<48x128xf32>
    %c0_14 = arith.constant 0 : index
    %c2 = arith.constant 2 : index
    %c0_15 = arith.constant 0 : index
    %14 = vector.load %arg1[%c0_14, %c2, %c0_15] : memref<3x18x72xbf16, #tpu.memory_space<vmem>>, vector<3x16x72xbf16>
    %15 = vector.shape_cast %14 : vector<3x16x72xbf16> to vector<48x72xbf16>
    %c2_16 = arith.constant 2 : index
    %c0_17 = arith.constant 0 : index
    %c0_18 = arith.constant 0 : index
    %16 = vector.load %arg2[%c2_16, %c0_17, %c0_18] : memref<3x72x128xbf16, #tpu.memory_space<vmem>>, vector<1x72x128xbf16>
    %17 = vector.shape_cast %16 : vector<1x72x128xbf16> to vector<72x128xbf16>
    %cst_19 = arith.constant dense<0.000000e+00> : vector<48x128xf32>
    %18 = tpu.matmul %15, %17, %cst_19 {dimension_numbers = #tpu.dot_dimension_numbers<[1], [0], [0], [1], [0, 0, 1, 1], [], []>} : vector<48x72xbf16>, vector<72x128xbf16>, vector<48x128xf32> -> vector<48x128xf32>
    %19 = arith.addf %13, %18 : vector<48x128xf32>
    %20 = vector.broadcast %0 : vector<1x128xf32> to vector<48x128xf32>
    %21 = arith.addf %19, %20 : vector<48x128xf32>
    %cst_20 = arith.constant 0.000000e+00 : f32
    %22 = vector.broadcast %cst_20 : f32 to vector<48x128xf32>
    %23 = arith.maximumf %21, %22 : vector<48x128xf32>
    %24 = vector.shape_cast %23 : vector<48x128xf32> to vector<3x16x128xf32>
    %c0_21 = arith.constant 0 : index
    %c0_22 = arith.constant 0 : index
    %c0_23 = arith.constant 0 : index
    %25 = vector.load %arg4[%c0_21, %c0_22, %c0_23] : memref<3x16x128xf32, #tpu.memory_space<vmem>>, vector<3x16x128xf32>
    tpu.vector_store %arg4[%c0_21, %c0_22, %c0_23], %24 {strides = array<i32>} : memref<3x16x128xf32, #tpu.memory_space<vmem>>, vector<3x16x128xf32>,
    return
  }
  func.func @transform_0(%arg0: i32) -> (i32, i32, i32) {
    %c0_i32 = arith.constant 0 : i32
    %c0_i32_0 = arith.constant 0 : i32
    %c0_i32_1 = arith.constant 0 : i32
    return %arg0, %c0_i32, %c0_i32_0 : i32, i32, i32
  }
  func.func @transform_1(%arg0: i32) -> (i32, i32, i32) {
    %c0_i32 = arith.constant 0 : i32
    %c0_i32_0 = arith.constant 0 : i32
    %c0_i32_1 = arith.constant 0 : i32
    %c0_i32_2 = arith.constant 0 : i32
    return %c0_i32, %c0_i32_0, %c0_i32_1 : i32, i32, i32
  }
  func.func @transform_2(%arg0: i32) -> (i32, i32) {
    %c0_i32 = arith.constant 0 : i32
    %c0_i32_0 = arith.constant 0 : i32
    %c0_i32_1 = arith.constant 0 : i32
    return %c0_i32, %c0_i32_0 : i32, i32
  }
  func.func @transform_3(%arg0: i32) -> (i32, i32, i32) {
    %c0_i32 = arith.constant 0 : i32
    %c0_i32_0 = arith.constant 0 : i32
    %c0_i32_1 = arith.constant 0 : i32
    return %arg0, %c0_i32, %c0_i32_0 : i32, i32, i32
  }
}

</mosaic_0001>

<llo_original>
// kernel: tile.8
$region0: #{tile.8}
  #allocation0 [shape = 's32[1]{0}', space=sflag, size = 0x4, scoped, tag = 'scoped memory for tile.8']
  %s0 = inlined_call_operand.vmem [shape: f32[8], index: 0, kind: input, shape index: {}]
  %s1 = inlined_call_operand.vmem [shape: f32[16,8], index: 1, kind: output, shape index: {}]
  // Predicated region
  $region2: #{tile.8} parent=0 // pred_check
    _
  $region3: #{tile.8} parent=0 // pred_check_branch
    %3 = sbr.rel (0) target = $region5
  $region4: #{tile.8} parent=0 // pred_region
    _
  $region5: #{tile.8} parent=0 // pred_fallthru
    _
  %v4 = vld [vmem:[%s0] ss:$0 sm:$0xff]
  %5 = vst [vmem:[%s1] sm:$0xff] %v4
  %s6 = scalar_lea.vmem %s1, 8
  %7 = vst [vmem:[%s6] sm:$0xff] %v4

// kernel: tile.9
$region0: #{tile.9}
  %s0 = inlined_call_operand.vmem [shape: f32[16,8], index: 0, kind: input, shape index: {}]
  %s1 = inlined_call_operand.vmem [shape: f32[1,128], index: 1, kind: output, shape index: {}]
  $region1: #{tile.9} parent=0
    #allocation0 [shape = 'u8[4096]{0}', space=vmem, size = 0x1000, scoped, tag = 'scoped mem for output reshape']
    %v2 = vld [vmem:[%s0] sm:$0x1]
    %vm3 = vcmask 64512
    %4 = vst.msk [vmem:[#allocation0] sm:$0x1] %vm3, %v2
    %s5 = scalar_lea.vmem %s0, 15
    %v6 = vld [vmem:[%s5] sm:$0x1]
    %7 = vrot.lane.b32.xlu0 %v6, 120
    %v8 = vpop.permute.xlu0 %7
    %vm9 = vcmask 1048512
    %10 = vst.msk [vmem:[#allocation0] sm:$0x1] %vm9, %v8
    %s11 = scalar_lea.vmem %s0, 14
    %v12 = vld [vmem:[%s11] sm:$0x1]
    %13 = vrot.lane.b32.xlu0 %v12, 112
    %v14 = vpop.permute.xlu0 %13
    %vm15 = vcmask 982912
    %16 = vst.msk [vmem:[#allocation0] sm:$0x1] %vm15, %v14
    %s17 = scalar_lea.vmem %s0, 13
    %v18 = vld [vmem:[%s17] sm:$0x1]
    %19 = vrot.lane.b32.xlu0 %v18, 104
    %v20 = vpop.permute.xlu0 %19
    %vm21 = vcmask 917312
    %22 = vst.msk [vmem:[#allocation0] sm:$0x1] %vm21, %v20
    %s23 = scalar_lea.vmem %s0, 12
    %v24 = vld [vmem:[%s23] sm:$0x1]
    %25 = vrot.lane.b32.xlu0 %v24, 96
    %v26 = vpop.permute.xlu0 %25
    %vm27 = vcmask 851712
    %28 = vst.msk [vmem:[#allocation0] sm:$0x1] %vm27, %v26
    %s29 = scalar_lea.vmem %s0, 11
    %v30 = vld [vmem:[%s29] sm:$0x1]
    %31 = vrot.lane.b32.xlu0 %v30, 88
    %v32 = vpop.permute.xlu0 %31
    %vm33 = vcmask 786112
    %34 = vst.msk [vmem:[#allocation0] sm:$0x1] %vm33, %v32
    %s35 = scalar_lea.vmem %s0, 10
    %v36 = vld [vmem:[%s35] sm:$0x1]
    %37 = vrot.lane.b32.xlu0 %v36, 80
    %v38 = vpop.permute.xlu0 %37
    %vm39 = vcmask 720512
    %40 = vst.msk [vmem:[#allocation0] sm:$0x1] %vm39, %v38
    %s41 = scalar_lea.vmem %s0, 9
    %v42 = vld [vmem:[%s41] sm:$0x1]
    %43 = vrot.lane.b32.xlu0 %v42, 72
    %v44 = vpop.permute.xlu0 %43
    %vm45 = vcmask 654912
    %46 = vst.msk [vmem:[#allocation0] sm:$0x1] %vm45, %v44
    %s47 = scalar_lea.vmem %s0, 8
    %v48 = vld [vmem:[%s47] sm:$0x1]
    %49 = vrot.lane.b32.xlu0 %v48, 64
    %v50 = vpop.permute.xlu0 %49
    %vm51 = vcmask 589312
    %52 = vst.msk [vmem:[#allocation0] sm:$0x1] %vm51, %v50
    %s53 = scalar_lea.vmem %s0, 7
    %v54 = vld [vmem:[%s53] sm:$0x1]
    %55 = vrot.lane.b32.xlu0 %v54, 56
    %v56 = vpop.permute.xlu0 %55
    %vm57 = vcmask 523712
    %58 = vst.msk [vmem:[#allocation0] sm:$0x1] %vm57, %v56
    %s59 = scalar_lea.vmem %s0, 6
    %v60 = vld [vmem:[%s59] sm:$0x1]
    %61 = vrot.lane.b32.xlu0 %v60, 48
    %v62 = vpop.permute.xlu0 %61
    %vm63 = vcmask 458112
    %64 = vst.msk [vmem:[#allocation0] sm:$0x1] %vm63, %v62
    %s65 = scalar_lea.vmem %s0, 5
    %v66 = vld [vmem:[%s65] sm:$0x1]
    %67 = vrot.lane.b32.xlu0 %v66, 40
    %v68 = vpop.permute.xlu0 %67
    %vm69 = vcmask 392512
    %70 = vst.msk [vmem:[#allocation0] sm:$0x1] %vm69, %v68
    %s71 = scalar_lea.vmem %s0, 4
    %v72 = vld [vmem:[%s71] sm:$0x1]
    %73 = vrot.lane.b32.xlu0 %v72, 32
    %v74 = vpop.permute.xlu0 %73
    %vm75 = vcmask 326912
    %76 = vst.msk [vmem:[#allocation0] sm:$0x1] %vm75, %v74
    %s77 = scalar_lea.vmem %s0, 3
    %v78 = vld [vmem:[%s77] sm:$0x1]
    %79 = vrot.lane.b32.xlu0 %v78, 24
    %v80 = vpop.permute.xlu0 %79
    %vm81 = vcmask 261312
    %82 = vst.msk [vmem:[#allocation0] sm:$0x1] %vm81, %v80
    %s83 = scalar_lea.vmem %s0, 2
    %v84 = vld [vmem:[%s83] sm:$0x1]
    %85 = vrot.lane.b32.xlu0 %v84, 16
    %v86 = vpop.permute.xlu0 %85
    %vm87 = vcmask 195712
    %88 = vst.msk [vmem:[#allocation0] sm:$0x1] %vm87, %v86
    %s89 = scalar_lea.vmem %s0, 1
    %v90 = vld [vmem:[%s89] sm:$0x1]
    %91 = vrot.lane.b32.xlu0 %v90, 8
    %v92 = vpop.permute.xlu0 %91
    %vm93 = vcmask 130112
    %94 = vst.msk [vmem:[#allocation0] sm:$0x1] %vm93, %v92
    %s96 = ssub.s32 2, 1
    %v97 = vld [vmem:[#allocation0] sm:%s96]
    %s99 = ssub.s32 2, 1
    %100 = vst [vmem:[%s1] sm:%s99] %v97

// kernel: block_forward.1
$region0: #{block_forward.1}
  #allocation0 [shape = 'u32[]', space=smem, size = 0x4, offset = 0x4, fixed_abs, tag = 'smem constant byte address 0x4 - core index']
  #allocation1 [shape = 'u32[72,128]{1,0:T(1,128)}', space=vmem, size = 0x9000, scoped, tag = 'internal scratch']
  %s0 = inlined_call_operand.vmem [shape: bf16[6,18,72], index: 0, kind: input, shape index: {}]
  %s1 = inlined_call_operand.vmem [shape: bf16[3,72,128], index: 1, kind: input, shape index: {}]
  %s2 = inlined_call_operand.vmem [shape: f32[1,128], index: 2, kind: input, shape index: {}]
  %s3 = inlined_call_operand.vmem [shape: f32[6,16,128], index: 3, kind: output, shape index: {}]
  %s4 = sld [smem:[#allocation0]]
  $region45: #{block_forward.1} parent=0
    _
  %s6 = ssub.s32 1, %s4
  %s7 = scalar_select 0, %s6, %s4
  loop: start=0, step=1, limit=4
  $region2: #{block_forward.1} parent=0 // loop_pre_header
    _
  $region3: #{block_forward.1} parent=0 // loop_header
    %s9 = sphi 0, %s13
    %p10 = scmp.ge.s32.totalorder %s9, 4
    %s19 = sphi 0, %s21
    %s22 = sphi 0, %s19
    %s23 = sphi 0, %s22
    %s39 = sphi 0, %s23
    %s43 = sphi 0, %s43
    %s45 = sphi 0, %s43
    %s46 = sphi 0, %s45
    %s60 = sphi 0, %s46
    %s64 = sphi 0, %s64
    %s66 = sphi 0, %s64
    %s67 = sphi 0, %s66
    %s81 = sphi 0, %s67
    %s87 = sphi 0, %s89
    %s90 = sphi 0, %s87
    %s91 = sphi 0, %s90
    %s107 = sphi 0, %s91
  $region4: #{block_forward.1} parent=0 // loop_header_branch
    %12 = sbr.rel (%p10) target = $region8
  $region5: #{block_forward.1} parent=0 // loop_body
    %s14 = ssub.s32 %s9, 1
    %s15 = ssub.s32 %s9, 2
    %s16 = sadd.s32 %s9, 1
    %s17 = ssub.s32 %s9, %s16
    %p18 = scmp.eq.s32.totalorder %s17, 0
    %s20 = sadd.s32 %s19, 1
    %s21 = scalar_select %p18, %s19, %s20
    %p24 = pneg %p18
    %p25 = scmp.eq.s32.totalorder %s9, 1
    %p26 = por %p24, %p25
    %p27 = scmp.ne.s32.totalorder %s19, %s22
    %p28 = scmp.eq.s32.totalorder %s9, 0
    %p29 = por %p27, %p28
    %p30 = scmp.ne.s32.totalorder %s19, %s22
    %p31 = scmp.eq.s32.totalorder %s14, 1
    %p32 = por %p30, %p31
    %p33 = scmp.ne.s32.totalorder %s22, %s23
    %p34 = scmp.eq.s32.totalorder %s14, 0
    %p35 = por %p33, %p34
    %p36 = scmp.ne.s32.totalorder %s22, %s23
    %p37 = scmp.eq.s32.totalorder %s15, 1
    %p38 = por %p36, %p37
    %p40 = scmp.ne.s32.totalorder %s23, %s39
    %p41 = scmp.eq.s32.totalorder %s15, 0
    %p42 = por %p40, %p41
    %s44 = sadd.s32 %s43, 1
    %p47 = scmp.eq.s32.totalorder %s9, 1
    %p48 = scmp.ne.s32.totalorder %s43, %s45
    %p49 = scmp.eq.s32.totalorder %s9, 0
    %p50 = por %p48, %p49
    %p51 = scmp.ne.s32.totalorder %s43, %s45
    %p52 = scmp.eq.s32.totalorder %s14, 1
    %p53 = por %p51, %p52
    %p54 = scmp.ne.s32.totalorder %s45, %s46
    %p55 = scmp.eq.s32.totalorder %s14, 0
    %p56 = por %p54, %p55
    %p57 = scmp.ne.s32.totalorder %s45, %s46
    %p58 = scmp.eq.s32.totalorder %s15, 1
    %p59 = por %p57, %p58
    %p61 = scmp.ne.s32.totalorder %s46, %s60
    %p62 = scmp.eq.s32.totalorder %s15, 0
    %p63 = por %p61, %p62
    %s65 = sadd.s32 %s64, 1
    %p68 = scmp.eq.s32.totalorder %s9, 1
    %p69 = scmp.ne.s32.totalorder %s64, %s66
    %p70 = scmp.eq.s32.totalorder %s9, 0
    %p71 = por %p69, %p70
    %p72 = scmp.ne.s32.totalorder %s64, %s66
    %p73 = scmp.eq.s32.totalorder %s14, 1
    %p74 = por %p72, %p73
    %p75 = scmp.ne.s32.totalorder %s66, %s67
    %p76 = scmp.eq.s32.totalorder %s14, 0
    %p77 = por %p75, %p76
    %p78 = scmp.ne.s32.totalorder %s66, %s67
    %p79 = scmp.eq.s32.totalorder %s15, 1
    %p80 = por %p78, %p79
    %p82 = scmp.ne.s32.totalorder %s67, %s81
    %p83 = scmp.eq.s32.totalorder %s15, 0
    %p84 = por %p82, %p83
    %s85 = ssub.s32 %s9, %s16
    %p86 = scmp.eq.s32.totalorder %s85, 0
    %s88 = sadd.s32 %s87, 1
    %s89 = scalar_select %p86, %s87, %s88
    %p92 = pneg %p86
    %p93 = scmp.eq.s32.totalorder %s9, 1
    %p94 = por %p92, %p93
    %p95 = scmp.ne.s32.totalorder %s87, %s90
    %p96 = scmp.eq.s32.totalorder %s9, 0
    %p97 = por %p95, %p96
    %p98 = scmp.ne.s32.totalorder %s87, %s90
    %p99 = scmp.eq.s32.totalorder %s14, 1
    %p100 = por %p98, %p99
    %p101 = scmp.ne.s32.totalorder %s90, %s91
    %p102 = scmp.eq.s32.totalorder %s14, 0
    %p103 = por %p101, %p102
    %p104 = scmp.ne.s32.totalorder %s90, %s91
    %p105 = scmp.eq.s32.totalorder %s15, 1
    %p106 = por %p104, %p105
    %p108 = scmp.ne.s32.totalorder %s91, %s107
    %p109 = scmp.eq.s32.totalorder %s15, 0
    %p110 = por %p108, %p109
    %p111 = scmp.le.s32.totalorder 1, %s9
    %p112 = scmp.lt.s32.totalorder %s9, 3
    %p113 = pnand %p111, %p112
    %p114 = pneg %p113
    // Predicated region
    $region9: #{block_forward.1} parent=5 // pred_check
      _
    $region10: #{block_forward.1} parent=5 // pred_check_branch
      %116 = sbr.rel (%p113) target = $region12
    $region11: #{block_forward.1} parent=5 // pred_region
      %s117 = ssub.s32 %s9, 1
      // Predicated region
      $region13: #{block_forward.1} parent=11 // pred_check
        %p118 = pneg %p56
      $region14: #{block_forward.1} parent=11 // pred_check_branch
        %120 = sbr.rel (%p118) target = $region16
      $region15: #{block_forward.1} parent=11 // pred_region
        _
      $region16: #{block_forward.1} parent=11 // pred_fallthru
        _
      // Predicated region
      $region17: #{block_forward.1} parent=11 // pred_check
        %p121 = pneg %p77
      $region18: #{block_forward.1} parent=11 // pred_check_branch
        %123 = sbr.rel (%p121) target = $region20
      $region19: #{block_forward.1} parent=11 // pred_region
        _
      $region20: #{block_forward.1} parent=11 // pred_fallthru
        _
    $region12: #{block_forward.1} parent=5 // pred_fallthru
      _
    %p124 = scmp.lt.s32.totalorder %s9, 2
    // Predicated region
    $region21: #{block_forward.1} parent=5 // pred_check
      %p125 = pneg %p124
    $region22: #{block_forward.1} parent=5 // pred_check_branch
      %127 = sbr.rel (%p125) target = $region24
    $region23: #{block_forward.1} parent=5 // pred_region
      // Predicated region
      $region25: #{block_forward.1} parent=23 // pred_check
        %p128 = pneg %p29
      $region26: #{block_forward.1} parent=23 // pred_check_branch
        %130 = sbr.rel (%p128) target = $region28
      $region27: #{block_forward.1} parent=23 // pred_region
        %s131 = smul.u32 3, %s9
        %p132 = scmp.lt.s32.totalorder %s131, 5
        %s133 = scalar_select %p132, %s131, 5
        %s134 = smul.addr %s133, 3
        %s135 = smul.addr %s134, 4
        %s136 = scalar_lea.vmem %s0, %s135
        %s137 = smul.u32 3, %s9
      $region28: #{block_forward.1} parent=23 // pred_fallthru
        _
    $region24: #{block_forward.1} parent=5 // pred_fallthru
      _
    %p138 = scmp.le.s32.totalorder 1, %s9
    %p139 = scmp.lt.s32.totalorder %s9, 3
    %p140 = pnand %p138, %p139
    %p141 = pneg %p140
    // Predicated region
    $region29: #{block_forward.1} parent=5 // pred_check
      _
    $region30: #{block_forward.1} parent=5 // pred_check_branch
      %143 = sbr.rel (%p140) target = $region32
    $region31: #{block_forward.1} parent=5 // pred_region
      %s144 = ssub.s32 %s9, 1
      %s145 = smul.u32 3, %s14
      %p146 = scmp.lt.s32.totalorder %s145, 5
      %s147 = scalar_select %p146, %s145, 5
      %s148 = smul.addr %s147, 3
      %s149 = smul.addr %s148, 4
      %s150 = scalar_lea.vmem %s0, %s149
      %p151 = pneg %p35
      %p152 = pneg %p32
      %p153 = pneg %p56
      %p154 = pneg %p53
      %p155 = pneg %p77
      %p156 = pneg %p74
      %p157 = pneg %p103
      %p158 = pneg %p100
      %s159 = smul.u32 3, %s14
      %p160 = scmp.lt.s32.totalorder %s159, 5
      %s161 = scalar_select %p160, %s159, 5
      %s162 = smul.addr %s161, 2
      %s163 = smul.addr %s162, 8
      %s164 = scalar_lea.vmem %s3, %s163
      %s165 = smul.u32 3, %s14
      %p166 = scmp.lt.s32.totalorder %s165, 5
      %s167 = scalar_select %p166, %s165, 5
      %s168 = smul.addr %s167, 3
      %s169 = smul.addr %s168, 4
      %s170 = scalar_lea.vmem %s0, %s169
      %s171 = smul.u32 3, %s14
      %s172 = smul.u32 3, %s14
      %p173 = scmp.lt.s32.totalorder %s172, 5
      %s174 = scalar_select %p173, %s172, 5
      %s175 = smul.addr %s174, 2
      %s176 = smul.addr %s175, 8
      %s177 = scalar_lea.vmem %s3, %s176
      %s178 = smul.u32 3, %s14
      %v180 = vld [vmem:[%s2] sm:$0x1]
      %v181 = vld [vmem:[%s170] sm:$0xf]
      %v182 = vld [vmem:[%s170 + $0x4] sm:$0xf]
      %v183 = vld [vmem:[%s170 + $0xc] sm:$0xf]
      %v184 = vld [vmem:[%s170 + $0x10] sm:$0xf]
      %v185 = vld [vmem:[%s170 + $0x18] sm:$0xf]
      %v186 = vld [vmem:[%s170 + $0x1c] sm:$0xf]
      %v187 = vld [vmem:[%s1] sm:$0xf]
      %v188 = vld [vmem:[%s1 + $0x4] sm:$0xf]
      %v189 = vld [vmem:[%s1 + $0x8] sm:$0xf]
      %v190 = vld [vmem:[%s1 + $0xc] sm:$0xf]
      %v191 = vld [vmem:[%s1 + $0x10] sm:$0xf]
      %v192 = vld [vmem:[%s1 + $0x14] sm:$0xf]
      %v193 = vld [vmem:[%s1 + $0x18] sm:$0xf]
      %v194 = vld [vmem:[%s1 + $0x1c] sm:$0xf]
      %v195 = vld [vmem:[%s1 + $0x20] sm:$0xf]
      %v196 = vld [vmem:[%s170 + $0x8] sm:$0x1]
      %v197 = vld [vmem:[%s170 + $0x14] sm:$0x1]
      %v198 = vld [vmem:[%s170 + $0x20] sm:$0x1]
      %vm199 = vsmask.f32 3328
      %vm200 = vsmask.f32 7440
      %vm201 = vmor %vm199, %vm200
      %v203 = vshrl.u32 %v181, 16
      %v205 = vrot.slane %v203, 4
      %v206 = vshll.u32 %v181, 16
      %v208 = vrot.slane %v206, 5
      %v209 = vor.u32 %v205, %v208
      %v210 = vrot.slane %v209, 4
      %v212 = vshll.u32 %v182, 16
      %v214 = vrot.slane %v212, 5
      %v215 = vsel %vm201, %v210, %v214
      %v216 = vshrl.u32 %v182, 16
      %v218 = vrot.slane %v216, 4
      %v219 = vor.u32 %v218, %v214
      %v220 = vrot.slane %v219, 4
      %v222 = vshll.u32 %v196, 16
      %v224 = vrot.slane %v222, 5
      %v225 = vsel %vm201, %v220, %v224
      %v227 = vshrl.u32 %v183, 16
      %v229 = vrot.slane %v227, 4
      %v230 = vshll.u32 %v183, 16
      %v232 = vrot.slane %v230, 5
      %v233 = vor.u32 %v229, %v232
      %v234 = vrot.slane %v233, 4
      %v236 = vshll.u32 %v184, 16
      %v238 = vrot.slane %v236, 5
      %v239 = vsel %vm201, %v234, %v238
      %v240 = vshrl.u32 %v184, 16
      %v242 = vrot.slane %v240, 4
      %v243 = vor.u32 %v242, %v238
      %v244 = vrot.slane %v243, 4
      %v246 = vshll.u32 %v197, 16
      %v248 = vrot.slane %v246, 5
      %v249 = vsel %vm201, %v244, %v248
      %v251 = vshrl.u32 %v185, 16
      %v253 = vrot.slane %v251, 4
      %v254 = vshll.u32 %v185, 16
      %v256 = vrot.slane %v254, 5
      %v257 = vor.u32 %v253, %v256
      %v258 = vrot.slane %v257, 4
      %v260 = vshll.u32 %v186, 16
      %v262 = vrot.slane %v260, 5
      %v263 = vsel %vm201, %v258, %v262
      %v264 = vshrl.u32 %v186, 16
      %v266 = vrot.slane %v264, 4
      %v267 = vor.u32 %v266, %v262
      %v268 = vrot.slane %v267, 4
      %v270 = vshll.u32 %v198, 16
      %v272 = vrot.slane %v270, 5
      %v273 = vsel %vm201, %v268, %v272
      %s274 = scalar_lea.vmem %s1, 36
      %v275 = vld [vmem:[%s274] sm:$0xf]
      %v276 = vld [vmem:[%s274 + $0x4] sm:$0xf]
      %v277 = vld [vmem:[%s274 + $0x8] sm:$0xf]
      %v278 = vld [vmem:[%s274 + $0xc] sm:$0xf]
      %v279 = vld [vmem:[%s274 + $0x10] sm:$0xf]
      %v280 = vld [vmem:[%s274 + $0x14] sm:$0xf]
      %v281 = vld [vmem:[%s274 + $0x18] sm:$0xf]
      %v282 = vld [vmem:[%s274 + $0x1c] sm:$0xf]
      %v283 = vld [vmem:[%s274 + $0x20] sm:$0xf]
      %v284 = vunpack.c.l.b16 %v215
      %v285 = vunpack.c.l.b16 %v225
      %v286 = vunpack.c.l.b16 %v239
      %v287 = vunpack.c.l.b16 %v249
      %v288 = vunpack.c.l.b16 %v263
      %v289 = vunpack.c.l.b16 %v273
      %v290 = vpack.c.b16 %v285, %v284
      %v291 = vpack.c.b16 %v287, %v286
      %v292 = vpack.c.b16 %v289, %v288
      %v302 = vunpack.c.l.b16 %v275
      %v303 = vunpack.c.l.b16 %v276
      %v304 = vunpack.c.l.b16 %v277
      %v305 = vunpack.c.l.b16 %v278
      %v306 = vunpack.c.l.b16 %v279
      %v307 = vunpack.c.l.b16 %v280
      %v308 = vunpack.c.l.b16 %v281
      %v309 = vunpack.c.l.b16 %v282
      %v310 = vunpack.c.l.b16 %v283
      %v311 = vpack.c.b16 %v303, %v302
      %v312 = vpack.c.b16 %v305, %v304
      %v313 = vpack.c.b16 %v307, %v306
      %v314 = vpack.c.b16 %v309, %v308
      %v315 = vpack.c.b16 %v310, %v310
      %vm320 = vcmask 588800
      %v322 = vsel %vm320, %v290, 0
      %v325 = vsel %vm320, %v291, 0
      %v328 = vsel %vm320, %v292, 0
      %vm330 = vcmask 1043456
      %v332 = vsel %vm330, %v315, 0
      %334 = vmatpush.bf16.msra.mxu0 0
      %335 = vmatpush.bf16.msra.mxu0 0
      %336 = vmatpush.bf16.msra.mxu0 0
      %337 = vmatpush.bf16.msra.mxu0 %v332
      %338 = vmatpush.bf16.msra.mxu0 %v314
      %339 = vmatpush.bf16.msra.mxu0 %v313
      %340 = vmatpush.bf16.msra.mxu0 %v312
      %341 = vmatpush.bf16.msra.mxu0 %v311
      %342 = vmatmul.bf16.gmra.mxu0 %v322
      %v343 = vpop.f32.mrf.mxu0
      %v344 = vadd.f32 0.0, %v343
      %v345 = vpop.f32.mrf.mxu0
      %v346 = vadd.f32 0.0, %v345
      %347 = vmatmul.bf16.gmra.mxu0 %v325
      %v348 = vpop.f32.mrf.mxu0
      %v349 = vadd.f32 0.0, %v348
      %v350 = vpop.f32.mrf.mxu0
      %v351 = vadd.f32 0.0, %v350
      %352 = vmatmul.bf16.gmra.mxu0 %v328
      %v353 = vpop.f32.mrf.mxu0
      %v354 = vadd.f32 0.0, %v353
      %v355 = vpop.f32.mrf.mxu0
      %v356 = vadd.f32 0.0, %v355
      %357 = vdwg.mxu0
      %v364 = vunpack.c.l.b16 %v181
      %v365 = vunpack.c.l.b16 %v182
      %v366 = vunpack.c.l.b16 %v183
      %v367 = vunpack.c.l.b16 %v184
      %v368 = vunpack.c.l.b16 %v185
      %v369 = vunpack.c.l.b16 %v186
      %v370 = vpack.c.b16 %v365, %v364
      %v371 = vpack.c.b16 %v367, %v366
      %v372 = vpack.c.b16 %v369, %v368
      %v382 = vunpack.c.l.b16 %v187
      %v383 = vunpack.c.l.b16 %v188
      %v384 = vunpack.c.l.b16 %v189
      %v385 = vunpack.c.l.b16 %v190
      %v386 = vunpack.c.l.b16 %v191
      %v387 = vunpack.c.l.b16 %v192
      %v388 = vunpack.c.l.b16 %v193
      %v389 = vunpack.c.l.b16 %v194
      %v390 = vunpack.c.l.b16 %v195
      %v391 = vpack.c.b16 %v383, %v382
      %v392 = vpack.c.b16 %v385, %v384
      %v393 = vpack.c.b16 %v387, %v386
      %v394 = vpack.c.b16 %v389, %v388
      %v395 = vpack.c.b16 %v390, %v390
      %v401 = vsel %vm320, %v370, 0
      %v404 = vsel %vm320, %v371, 0
      %v407 = vsel %vm320, %v372, 0
      %v410 = vsel %vm330, %v395, 0
      %412 = vmatpush.bf16.msra.mxu0 0
      %413 = vmatpush.bf16.msra.mxu0 0
      %414 = vmatpush.bf16.msra.mxu0 0
      %415 = vmatpush.bf16.msra.mxu0 %v410
      %416 = vmatpush.bf16.msra.mxu0 %v394
      %417 = vmatpush.bf16.msra.mxu0 %v393
      %418 = vmatpush.bf16.msra.mxu0 %v392
      %419 = vmatpush.bf16.msra.mxu0 %v391
      %420 = vmatmul.bf16.gmra.mxu0 %v401
      %v421 = vpop.f32.mrf.mxu0
      %v422 = vadd.f32 %v344, %v421
      %v423 = vpop.f32.mrf.mxu0
      %v424 = vadd.f32 %v346, %v423
      %425 = vmatmul.bf16.gmra.mxu0 %v404
      %v426 = vpop.f32.mrf.mxu0
      %v427 = vadd.f32 %v349, %v426
      %v428 = vpop.f32.mrf.mxu0
      %v429 = vadd.f32 %v351, %v428
      %430 = vmatmul.bf16.gmra.mxu0 %v407
      %v431 = vpop.f32.mrf.mxu0
      %v432 = vadd.f32 %v354, %v431
      %v433 = vpop.f32.mrf.mxu0
      %v434 = vadd.f32 %v356, %v433
      %435 = vdwg.mxu0
      %v436 = vld [vmem:[%s170] sm:$0xe]
      %v437 = vld [vmem:[%s170 + $0xc] sm:$0xe]
      %v438 = vld [vmem:[%s170 + $0x18] sm:$0xe]
      %vm445 = vcmask 1042432
      %vm446 = vcmask 1046532
      %vm447 = vmor %vm445, %vm446
      %v448 = vrot.slane %v436, 5
      %v449 = vrot.slane %v448, 4
      %v450 = vrot.slane %v182, 5
      %v451 = vsel %vm447, %v449, %v450
      %v452 = vrot.slane %v450, 4
      %v453 = vrot.slane %v196, 5
      %v454 = vsel %vm447, %v452, %v453
      %v455 = vrot.slane %v437, 5
      %v456 = vrot.slane %v455, 4
      %v457 = vrot.slane %v184, 5
      %v458 = vsel %vm447, %v456, %v457
      %v459 = vrot.slane %v457, 4
      %v460 = vrot.slane %v197, 5
      %v461 = vsel %vm447, %v459, %v460
      %v462 = vrot.slane %v438, 5
      %v463 = vrot.slane %v462, 4
      %v464 = vrot.slane %v186, 5
      %v465 = vsel %vm447, %v463, %v464
      %v466 = vrot.slane %v464, 4
      %v467 = vrot.slane %v198, 5
      %v468 = vsel %vm447, %v466, %v467
      %s469 = scalar_lea.vmem %s1, 72
      %v470 = vld [vmem:[%s469] sm:$0xf]
      %v471 = vld [vmem:[%s469 + $0x4] sm:$0xf]
      %v472 = vld [vmem:[%s469 + $0x8] sm:$0xf]
      %v473 = vld [vmem:[%s469 + $0xc] sm:$0xf]
      %v474 = vld [vmem:[%s469 + $0x10] sm:$0xf]
      %v475 = vld [vmem:[%s469 + $0x14] sm:$0xf]
      %v476 = vld [vmem:[%s469 + $0x18] sm:$0xf]
      %v477 = vld [vmem:[%s469 + $0x1c] sm:$0xf]
      %v478 = vld [vmem:[%s469 + $0x20] sm:$0xf]
      %v479 = vunpack.c.l.b16 %v451
      %v480 = vunpack.c.l.b16 %v454
      %v481 = vunpack.c.l.b16 %v458
      %v482 = vunpack.c.l.b16 %v461
      %v483 = vunpack.c.l.b16 %v465
      %v484 = vunpack.c.l.b16 %v468
      %v485 = vpack.c.b16 %v480, %v479
      %v486 = vpack.c.b16 %v482, %v481
      %v487 = vpack.c.b16 %v484, %v483
      %v497 = vunpack.c.l.b16 %v470
      %v498 = vunpack.c.l.b16 %v471
      %v499 = vunpack.c.l.b16 %v472
      %v500 = vunpack.c.l.b16 %v473
      %v501 = vunpack.c.l.b16 %v474
      %v502 = vunpack.c.l.b16 %v475
      %v503 = vunpack.c.l.b16 %v476
      %v504 = vunpack.c.l.b16 %v477
      %v505 = vunpack.c.l.b16 %v478
      %v506 = vpack.c.b16 %v498, %v497
      %v507 = vpack.c.b16 %v500, %v499
      %v508 = vpack.c.b16 %v502, %v501
      %v509 = vpack.c.b16 %v504, %v503
      %v510 = vpack.c.b16 %v505, %v505
      %v516 = vsel %vm320, %v485, 0
      %v519 = vsel %vm320, %v486, 0
      %v522 = vsel %vm320, %v487, 0
      %v525 = vsel %vm330, %v510, 0
      %527 = vmatpush.bf16.msra.mxu0 0
      %528 = vmatpush.bf16.msra.mxu0 0
      %529 = vmatpush.bf16.msra.mxu0 0
      %530 = vmatpush.bf16.msra.mxu0 %v525
      %531 = vmatpush.bf16.msra.mxu0 %v509
      %532 = vmatpush.bf16.msra.mxu0 %v508
      %533 = vmatpush.bf16.msra.mxu0 %v507
      %534 = vmatpush.bf16.msra.mxu0 %v506
      %535 = vmatmul.bf16.gmra.mxu0 %v516
      %v536 = vpop.f32.mrf.mxu0
      %v537 = vadd.f32 0.0, %v536
      %v538 = vpop.f32.mrf.mxu0
      %v539 = vadd.f32 0.0, %v538
      %540 = vmatmul.bf16.gmra.mxu0 %v519
      %v541 = vpop.f32.mrf.mxu0
      %v542 = vadd.f32 0.0, %v541
      %v543 = vpop.f32.mrf.mxu0
      %v544 = vadd.f32 0.0, %v543
      %545 = vmatmul.bf16.gmra.mxu0 %v522
      %v546 = vpop.f32.mrf.mxu0
      %v547 = vadd.f32 0.0, %v546
      %v548 = vpop.f32.mrf.mxu0
      %v549 = vadd.f32 0.0, %v548
      %550 = vdwg.mxu0
      %v551 = vadd.f32 %v422, %v537
      %v552 = vadd.f32 %v424, %v539
      %v553 = vadd.f32 %v427, %v542
      %v554 = vadd.f32 %v429, %v544
      %v555 = vadd.f32 %v432, %v547
      %v556 = vadd.f32 %v434, %v549
      %v558 = vperm.slane %v180, 0
      %v560 = vadd.f32 %v551, %v558
      %v561 = vadd.f32 %v552, %v558
      %v562 = vadd.f32 %v553, %v558
      %v563 = vadd.f32 %v554, %v558
      %v564 = vadd.f32 %v555, %v558
      %v565 = vadd.f32 %v556, %v558
      %v566 = vmax.f32 %v560, 0.0
      %v567 = vmax.f32 %v561, 0.0
      %v568 = vmax.f32 %v562, 0.0
      %v569 = vmax.f32 %v563, 0.0
      %v570 = vmax.f32 %v564, 0.0
      %v571 = vmax.f32 %v565, 0.0
      %572 = vst [vmem:[%s177] sm:$0xff] %v566
      %573 = vst [vmem:[%s177 + $0x8] sm:$0xff] %v567
      %574 = vst [vmem:[%s177 + $0x10] sm:$0xff] %v568
      %575 = vst [vmem:[%s177 + $0x18] sm:$0xff] %v569
      %576 = vst [vmem:[%s177 + $0x20] sm:$0xff] %v570
      %577 = vst [vmem:[%s177 + $0x28] sm:$0xff] %v571
      %s578 = smul.u32 3, %s14
      %p579 = scmp.lt.s32.totalorder %s578, 5
      %s580 = scalar_select %p579, %s578, 5
      %s581 = smul.addr %s580, 2
      %s582 = smul.addr %s581, 8
      %s583 = scalar_lea.vmem %s3, %s582
      // Predicated region
      $region33: #{block_forward.1} parent=31 // pred_check
        %p584 = pneg %p100
      $region34: #{block_forward.1} parent=31 // pred_check_branch
        %586 = sbr.rel (%p584) target = $region36
      $region35: #{block_forward.1} parent=31 // pred_region
        %s587 = smul.u32 3, %s14
      $region36: #{block_forward.1} parent=31 // pred_fallthru
        _
    $region32: #{block_forward.1} parent=5 // pred_fallthru
      _
    %p588 = scmp.le.s32.totalorder 2, %s9
    // Predicated region
    $region37: #{block_forward.1} parent=5 // pred_check
      %p589 = pneg %p588
    $region38: #{block_forward.1} parent=5 // pred_check_branch
      %591 = sbr.rel (%p589) target = $region40
    $region39: #{block_forward.1} parent=5 // pred_region
      %s592 = ssub.s32 %s9, 2
      // Predicated region
      $region41: #{block_forward.1} parent=39 // pred_check
        %p593 = pneg %p106
      $region42: #{block_forward.1} parent=39 // pred_check_branch
        %595 = sbr.rel (%p593) target = $region44
      $region43: #{block_forward.1} parent=39 // pred_region
        %s596 = smul.u32 3, %s15
        %p597 = scmp.lt.s32.totalorder %s596, 5
        %s598 = scalar_select %p597, %s596, 5
        %s599 = smul.addr %s598, 2
        %s600 = smul.addr %s599, 8
        %s601 = scalar_lea.vmem %s3, %s600
      $region44: #{block_forward.1} parent=39 // pred_fallthru
        _
    $region40: #{block_forward.1} parent=5 // pred_fallthru
      _
  $region6: #{block_forward.1} parent=0 // loop_footer
    %s13 = sadd.s32 1, %s9
  $region7: #{block_forward.1} parent=0 // loop_footer_branch
    %8 = sbr.rel target = $region3
  $region8: #{block_forward.1} parent=0 // loop_exit
    _

</llo_original>
